<compile_context>
chip_gen: v6e
topology: v6e:2x2x1
jax: 0.10.0
libtpu: 0.0.40
codegen_flags: <defaults>
</compile_context>

<pallas_src>
import jax
import jax.numpy as jnp
from jax.experimental import pallas as pl
from jax.experimental.pallas import tpu as pltpu


def se_kernel(x_ref, w1t_ref, w2t_ref, o_ref):
    # x_ref:   (TB, C, L)   input dtype
    # w1t_ref: (C, Cr)      pre-transposed Linear1 weight, 1/L folded in
    # w2t_ref: (Cr, C)      pre-transposed Linear2 weight

    # Squeeze: channel sums over length (stats in f32); 1/L lives in w1t.
    y = jnp.sum(x_ref[...].astype(jnp.float32), axis=-1)                 # (TB, C)

    # Excitation: Linear -> ReLU -> Linear -> Sigmoid (f32 on MXU/EUP).
    h = jnp.dot(y, w1t_ref[...], preferred_element_type=jnp.float32)     # (TB, Cr)
    h = jnp.maximum(h, 0.0)
    s = jnp.dot(h, w2t_ref[...], preferred_element_type=jnp.float32)     # (TB, C)
    s = jax.nn.sigmoid(s)

    # Scale: re-read the VMEM-resident block (do NOT keep it live from the
    # reduction above) and stream the multiply/store in x's dtype.
    o_ref[...] = x_ref[...] * s[:, :, None].astype(o_ref.dtype)


def _num_tensorcores():
    """Best-effort TC-per-chip detection (v7x has 2, v5e/v6e have 1)."""
    try:
        kind = (getattr(jax.devices()[0], "device_kind", "") or "").lower()
        if "v7" in kind:
            return 2
    except Exception:
        pass
    return 1


def _pick_tb(b, per_batch_bytes, block_bytes, min_steps):
    """Largest divisor of b whose block fits block_bytes and keeps >= min_steps."""
    min_steps = max(1, min(min_steps, b))
    best = 1
    for tb in range(1, b + 1):
        if b % tb != 0:
            continue
        if tb * per_batch_bytes > block_bytes:
            continue
        if (b // tb) < min_steps:
            continue
        best = max(best, tb)
    return best


def se_layer(x, w1, w2, *, block_bytes=4 << 20):
    """x: (B, C, L); w1: (C//r, C), w2: (C, C//r) in PyTorch Linear (out, in) layout."""
    b, c, l = x.shape
    cr = w1.shape[0]
    assert w1.shape == (cr, c) and w2.shape == (c, cr)

    # Pre-transpose weights once (VMEM-resident via constant index_map) and
    # fold the 1/L of the global average pool into the first weight.
    w1t = w1.T.astype(jnp.float32) * (1.0 / l)   # (C, Cr)
    w2t = w2.T.astype(jnp.float32)               # (Cr, C)

    # TB: largest divisor of B whose (TB, C, L) block fits the byte budget.
    # Single-TC parts get no step-count floor; 2-TC parts (v7x) want >= 4
    # grid steps (>= 2 per core) so double-buffering overlaps DMA and compute.
    itemsize = jnp.dtype(x.dtype).itemsize
    per_batch = c * l * itemsize
    min_steps = 4 if _num_tensorcores() >= 2 else 1
    tb = _pick_tb(b, per_batch, block_bytes, min_steps)
    grid = (pl.cdiv(b, tb),)

    # Footprint ~= input + output blocks, each double-buffered, plus weights.
    block_b = tb * per_batch
    vmem_limit = min(48 << 20, max(32 << 20, 4 * block_b + (2 << 20)))

    return pl.pallas_call(
        se_kernel,
        out_shape=jax.ShapeDtypeStruct((b, c, l), x.dtype),
        grid=grid,
        in_specs=[
            pl.BlockSpec((tb, c, l), lambda i: (i, 0, 0)),
            pl.BlockSpec((c, cr), lambda i: (0, 0)),
            pl.BlockSpec((cr, c), lambda i: (0, 0)),
        ],
        out_specs=pl.BlockSpec((tb, c, l), lambda i: (i, 0, 0)),
        compiler_params=pltpu.CompilerParams(
            dimension_semantics=("parallel",),
            vmem_limit_bytes=vmem_limit),
    )(x, w1t, w2t)


def se_layer_ref(x, w1, w2):
    y = jnp.mean(x, axis=-1)                      # (B, C)
    h = jnp.maximum(y @ w1.T, 0.0)                # (B, C//r)
    s = jax.nn.sigmoid(h @ w2.T)                  # (B, C)
    return x * s[:, :, None]


if __name__ == "__main__":
    B, C, L = 4, 64, 128        # L is a multiple of 128 -> lane-dense stream
    reduction = 16
    Cr = C // reduction

    key = jax.random.PRNGKey(0)
    kx, k1, k2 = jax.random.split(key, 3)

    x = jax.random.normal(kx, (B, C, L), dtype=jnp.float32)
    # PyTorch Linear weight layout: (out_features, in_features), bias=False.
    w1 = jax.random.normal(k1, (Cr, C), dtype=jnp.float32) * 0.1
    w2 = jax.random.normal(k2, (C, Cr), dtype=jnp.float32) * 0.1

    out = se_layer(x, w1, w2)
    out = jax.block_until_ready(out)

    ref = se_layer_ref(x, w1, w2)
    assert out.shape == (B, C, L)
    assert jnp.allclose(out, ref, atol=1e-5, rtol=1e-5)

    print("KERNEL_OK")
</pallas_src>

<mosaic_0001>
module attributes {stable_mosaic.version = 11 : i64} {
  func.func @se_kernel(%arg0: i32, %arg1: memref<4x64x128xf32, #tpu.memory_space<vmem>>, %arg2: memref<64x4xf32, #tpu.memory_space<vmem>>, %arg3: memref<4x64xf32, #tpu.memory_space<vmem>>, %arg4: memref<4x64x128xf32, #tpu.memory_space<vmem>>) attributes {dimension_semantics = [#tpu.dimension_semantics<parallel>], iteration_bounds = array<i64: 1>, scalar_prefetch = 0 : i64, scratch_operands = 0 : i64, tpu.core_type = #tpu.core_type<tc>, window_params = [{transform_indices = @transform_0, window_bounds = array<i64: 4, 64, 128>}, {pipeline_mode = #tpu.pipeline_mode<synchronous>, transform_indices = @transform_1, window_bounds = array<i64: 64, 4>}, {pipeline_mode = #tpu.pipeline_mode<synchronous>, transform_indices = @transform_2, window_bounds = array<i64: 4, 64>}, {transform_indices = @transform_3, window_bounds = array<i64: 4, 64, 128>}]} {
    %c0 = arith.constant 0 : index
    %c0_0 = arith.constant 0 : index
    %c0_1 = arith.constant 0 : index
    %0 = vector.load %arg1[%c0, %c0_0, %c0_1] : memref<4x64x128xf32, #tpu.memory_space<vmem>>, vector<4x64x128xf32>
    %cst = arith.constant dense<0.000000e+00> : vector<4x64xf32>
    %1 = vector.multi_reduction <add>, %0, %cst [2] : vector<4x64x128xf32> to vector<4x64xf32>
    %c0_2 = arith.constant 0 : index
    %c0_3 = arith.constant 0 : index
    %2 = vector.load %arg2[%c0_2, %c0_3] : memref<64x4xf32, #tpu.memory_space<vmem>>, vector<64x4xf32>
    %cst_4 = arith.constant dense<0.000000e+00> : vector<4x4xf32>
    %3 = tpu.matmul %1, %2, %cst_4 {dimension_numbers = #tpu.dot_dimension_numbers<[1], [0], [0], [1], [0, 0, 1, 1], [], []>} : vector<4x64xf32>, vector<64x4xf32>, vector<4x4xf32> -> vector<4x4xf32>
    %cst_5 = arith.constant 0.000000e+00 : f32
    %4 = vector.broadcast %cst_5 : f32 to vector<4x4xf32>
    %5 = arith.maximumf %3, %4 : vector<4x4xf32>
    %c0_6 = arith.constant 0 : index
    %c0_7 = arith.constant 0 : index
    %6 = vector.load %arg3[%c0_6, %c0_7] : memref<4x64xf32, #tpu.memory_space<vmem>>, vector<4x64xf32>
    %cst_8 = arith.constant dense<0.000000e+00> : vector<4x64xf32>
    %7 = tpu.matmul %5, %6, %cst_8 {dimension_numbers = #tpu.dot_dimension_numbers<[1], [0], [0], [1], [0, 0, 1, 1], [], []>} : vector<4x4xf32>, vector<4x64xf32>, vector<4x64xf32> -> vector<4x64xf32>
    %8 = arith.negf %7 : vector<4x64xf32>
    %9 = math.exp %8 : vector<4x64xf32>
    %cst_9 = arith.constant 1.000000e+00 : f32
    %10 = vector.broadcast %cst_9 : f32 to vector<4x64xf32>
    %11 = arith.addf %10, %9 : vector<4x64xf32>
    %12 = arith.divf %10, %11 : vector<4x64xf32>
    %c0_10 = arith.constant 0 : index
    %c0_11 = arith.constant 0 : index
    %c0_12 = arith.constant 0 : index
    %13 = vector.load %arg1[%c0_10, %c0_11, %c0_12] : memref<4x64x128xf32, #tpu.memory_space<vmem>>, vector<4x64x128xf32>
    %14 = vector.shape_cast %12 : vector<4x64xf32> to vector<4x64x1xf32>
    %15 = vector.broadcast %14 : vector<4x64x1xf32> to vector<4x64x128xf32>
    %16 = arith.mulf %13, %15 : vector<4x64x128xf32>
    %c0_13 = arith.constant 0 : index
    %c0_14 = arith.constant 0 : index
    %c0_15 = arith.constant 0 : index
    %17 = vector.load %arg4[%c0_13, %c0_14, %c0_15] : memref<4x64x128xf32, #tpu.memory_space<vmem>>, vector<4x64x128xf32>
    tpu.vector_store %arg4[%c0_13, %c0_14, %c0_15], %16 {strides = array<i32>} : memref<4x64x128xf32, #tpu.memory_space<vmem>>, vector<4x64x128xf32>,
    return
  }
  func.func @transform_0(%arg0: i32) -> (i32, i32, i32) {
    %c0_i32 = arith.constant 0 : i32
    %c0_i32_0 = arith.constant 0 : i32
    %c0_i32_1 = arith.constant 0 : i32
    return %arg0, %c0_i32, %c0_i32_0 : i32, i32, i32
  }
  func.func @transform_1(%arg0: i32) -> (i32, i32) {
    %c0_i32 = arith.constant 0 : i32
    %c0_i32_0 = arith.constant 0 : i32
    %c0_i32_1 = arith.constant 0 : i32
    return %c0_i32, %c0_i32_0 : i32, i32
  }
  func.func @transform_2(%arg0: i32) -> (i32, i32) {
    %c0_i32 = arith.constant 0 : i32
    %c0_i32_0 = arith.constant 0 : i32
    %c0_i32_1 = arith.constant 0 : i32
    return %c0_i32, %c0_i32_0 : i32, i32
  }
  func.func @transform_3(%arg0: i32) -> (i32, i32, i32) {
    %c0_i32 = arith.constant 0 : i32
    %c0_i32_0 = arith.constant 0 : i32
    %c0_i32_1 = arith.constant 0 : i32
    return %arg0, %c0_i32, %c0_i32_0 : i32, i32, i32
  }
}

</mosaic_0001>

<llo_original>
// kernel: tpu_custom_call.1
$region0: #{tpu_custom_call.1}
  #allocation0 [shape = 'u32[]', space=smem, size = 0x4, offset = 0x4, fixed_abs, tag = 'smem constant byte address 0x4 - core index']
  #allocation1 [shape = 'u32[144,128]{1,0:T(1,128)}', space=vmem, size = 0x12000, scoped, tag = 'internal scratch']
  %s0 = inlined_call_operand.hbm [shape: f32[4,64,128], index: 0, kind: input, shape index: {}]
  %s1 = inlined_call_operand.vmem [shape: f32[64,4], index: 1, kind: input, shape index: {}]
  %s2 = inlined_call_operand.vmem [shape: f32[4,64], index: 2, kind: input, shape index: {}]
  %s3 = inlined_call_operand.hbm [shape: f32[4,64,128], index: 3, kind: output, shape index: {}]
  %s4 = sld [smem:[#allocation0]]
  $region26: #{tpu_custom_call.1} parent=0
    _
  %s6 = ssub.s32 1, %s4
  %s7 = scalar_select 0, %s6, %s4
  $region1: #{tpu_custom_call.1} parent=0
    #allocation2 [shape = 'u8[131072]{0}', space=vmem, size = 0x20000, scoped, tag = 'input window, operand 0, single buffered']
    #allocation3 [shape = 's32[1]{0}', space=sflag, size = 0x4, scoped, tag = 'scoped memory for tpu_custom_call.1']
    #allocation4 [shape = 's32[1]{0}', space=sflag, size = 0x4, scoped, tag = 'scoped memory for tpu_custom_call.1']
    #allocation5 [shape = 'u8[131072]{0}', space=vmem, size = 0x20000, scoped, tag = 'output window, operand 0, single buffered']
    %8 = vsyncpa [#allocation3], 0
    %9 = vsyncpa [#allocation4], 0
    // Predicated region
    $region2: #{tpu_custom_call.1} parent=1 // pred_check
      _
    $region3: #{tpu_custom_call.1} parent=1 // pred_check_branch
      %11 = sbr.rel (0) target = $region5
    $region4: #{tpu_custom_call.1} parent=1 // pred_region
      %s13 = ssub.s32 4096, 4096
      %14 = vsyncadd [#allocation3], %s13
      %s15 = sshll.u32 [#allocation2], 4
      %s16 = int_to_ptr.vmem [resolvable:$true] %s15
      %21 = dma.hbm_to_vmem [thread:$0]  %s0, 4096, %s16, [#allocation3], 128, 128, 8
    $region5: #{tpu_custom_call.1} parent=1 // pred_fallthru
      _
    // Predicated region
    $region6: #{tpu_custom_call.1} parent=1 // pred_check
      _
    $region7: #{tpu_custom_call.1} parent=1 // pred_check_branch
      %23 = sbr.rel (0) target = $region9
    $region8: #{tpu_custom_call.1} parent=1 // pred_region
      _
    $region9: #{tpu_custom_call.1} parent=1 // pred_fallthru
      _
    // Predicated region
    $region10: #{tpu_custom_call.1} parent=1 // pred_check
      _
    $region11: #{tpu_custom_call.1} parent=1 // pred_check_branch
      %25 = sbr.rel (0) target = $region13
    $region12: #{tpu_custom_call.1} parent=1 // pred_region
      _
    $region13: #{tpu_custom_call.1} parent=1 // pred_fallthru
      _
    // Predicated region
    $region14: #{tpu_custom_call.1} parent=1 // pred_check
      _
    $region15: #{tpu_custom_call.1} parent=1 // pred_check_branch
      %27 = sbr.rel (0) target = $region17
    $region16: #{tpu_custom_call.1} parent=1 // pred_region
      %28 = dma.done [#allocation3], 4096
    $region17: #{tpu_custom_call.1} parent=1 // pred_fallthru
      _
    %v29 = vld [vmem:[#allocation2] sm:$0xff]
    %v30 = vld [vmem:[#allocation2 + $0x8] sm:$0xff]
    %v31 = vld [vmem:[#allocation2 + $0x10] sm:$0xff]
    %v32 = vld [vmem:[#allocation2 + $0x18] sm:$0xff]
    %v33 = vld [vmem:[#allocation2 + $0x20] sm:$0xff]
    %v34 = vld [vmem:[#allocation2 + $0x28] sm:$0xff]
    %v35 = vld [vmem:[#allocation2 + $0x30] sm:$0xff]
    %v36 = vld [vmem:[#allocation2 + $0x38] sm:$0xff]
    %v37 = vld [vmem:[#allocation2 + $0x40] sm:$0xff]
    %v38 = vld [vmem:[#allocation2 + $0x48] sm:$0xff]
    %v39 = vld [vmem:[#allocation2 + $0x50] sm:$0xff]
    %v40 = vld [vmem:[#allocation2 + $0x58] sm:$0xff]
    %v41 = vld [vmem:[#allocation2 + $0x60] sm:$0xff]
    %v42 = vld [vmem:[#allocation2 + $0x68] sm:$0xff]
    %v43 = vld [vmem:[#allocation2 + $0x70] sm:$0xff]
    %v44 = vld [vmem:[#allocation2 + $0x78] sm:$0xff]
    %v45 = vld [vmem:[#allocation2 + $0x80] sm:$0xff]
    %v46 = vld [vmem:[#allocation2 + $0x88] sm:$0xff]
    %v47 = vld [vmem:[#allocation2 + $0x90] sm:$0xff]
    %v48 = vld [vmem:[#allocation2 + $0x98] sm:$0xff]
    %v49 = vld [vmem:[#allocation2 + $0xa0] sm:$0xff]
    %v50 = vld [vmem:[#allocation2 + $0xa8] sm:$0xff]
    %v51 = vld [vmem:[#allocation2 + $0xb0] sm:$0xff]
    %v52 = vld [vmem:[#allocation2 + $0xb8] sm:$0xff]
    %v53 = vld [vmem:[#allocation2 + $0xc0] sm:$0xff]
    %v54 = vld [vmem:[#allocation2 + $0xc8] sm:$0xff]
    %v55 = vld [vmem:[#allocation2 + $0xd0] sm:$0xff]
    %v56 = vld [vmem:[#allocation2 + $0xd8] sm:$0xff]
    %v57 = vld [vmem:[#allocation2 + $0xe0] sm:$0xff]
    %v58 = vld [vmem:[#allocation2 + $0xe8] sm:$0xff]
    %v59 = vld [vmem:[#allocation2 + $0xf0] sm:$0xff]
    %v60 = vld [vmem:[#allocation2 + $0xf8] sm:$0xff]
    %61 = vadd.xlane.f32.xlu0 %v29
    %v62 = vpop.xlane.xlu0 %61
    %63 = vadd.xlane.f32.xlu0 %v30
    %v64 = vpop.xlane.xlu0 %63
    %65 = vadd.xlane.f32.xlu0 %v31
    %v66 = vpop.xlane.xlu0 %65
    %67 = vadd.xlane.f32.xlu0 %v32
    %v68 = vpop.xlane.xlu0 %67
    %69 = vadd.xlane.f32.xlu0 %v33
    %v70 = vpop.xlane.xlu0 %69
    %71 = vadd.xlane.f32.xlu0 %v34
    %v72 = vpop.xlane.xlu0 %71
    %73 = vadd.xlane.f32.xlu0 %v35
    %v74 = vpop.xlane.xlu0 %73
    %75 = vadd.xlane.f32.xlu0 %v36
    %v76 = vpop.xlane.xlu0 %75
    %77 = vadd.xlane.f32.xlu0 %v37
    %v78 = vpop.xlane.xlu0 %77
    %79 = vadd.xlane.f32.xlu0 %v38
    %v80 = vpop.xlane.xlu0 %79
    %81 = vadd.xlane.f32.xlu0 %v39
    %v82 = vpop.xlane.xlu0 %81
    %83 = vadd.xlane.f32.xlu0 %v40
    %v84 = vpop.xlane.xlu0 %83
    %85 = vadd.xlane.f32.xlu0 %v41
    %v86 = vpop.xlane.xlu0 %85
    %87 = vadd.xlane.f32.xlu0 %v42
    %v88 = vpop.xlane.xlu0 %87
    %89 = vadd.xlane.f32.xlu0 %v43
    %v90 = vpop.xlane.xlu0 %89
    %91 = vadd.xlane.f32.xlu0 %v44
    %v92 = vpop.xlane.xlu0 %91
    %93 = vadd.xlane.f32.xlu0 %v45
    %v94 = vpop.xlane.xlu0 %93
    %95 = vadd.xlane.f32.xlu0 %v46
    %v96 = vpop.xlane.xlu0 %95
    %97 = vadd.xlane.f32.xlu0 %v47
    %v98 = vpop.xlane.xlu0 %97
    %99 = vadd.xlane.f32.xlu0 %v48
    %v100 = vpop.xlane.xlu0 %99
    %101 = vadd.xlane.f32.xlu0 %v49
    %v102 = vpop.xlane.xlu0 %101
    %103 = vadd.xlane.f32.xlu0 %v50
    %v104 = vpop.xlane.xlu0 %103
    %105 = vadd.xlane.f32.xlu0 %v51
    %v106 = vpop.xlane.xlu0 %105
    %107 = vadd.xlane.f32.xlu0 %v52
    %v108 = vpop.xlane.xlu0 %107
    %109 = vadd.xlane.f32.xlu0 %v53
    %v110 = vpop.xlane.xlu0 %109
    %111 = vadd.xlane.f32.xlu0 %v54
    %v112 = vpop.xlane.xlu0 %111
    %113 = vadd.xlane.f32.xlu0 %v55
    %v114 = vpop.xlane.xlu0 %113
    %115 = vadd.xlane.f32.xlu0 %v56
    %v116 = vpop.xlane.xlu0 %115
    %117 = vadd.xlane.f32.xlu0 %v57
    %v118 = vpop.xlane.xlu0 %117
    %119 = vadd.xlane.f32.xlu0 %v58
    %v120 = vpop.xlane.xlu0 %119
    %121 = vadd.xlane.f32.xlu0 %v59
    %v122 = vpop.xlane.xlu0 %121
    %123 = vadd.xlane.f32.xlu0 %v60
    %v124 = vpop.xlane.xlu0 %123
    %v125 = vld [vmem:[%s1] sm:$0xff]
    %v126 = vld [vmem:[%s1 + $0x8] sm:$0xff]
    %v127 = vld [vmem:[%s1 + $0x10] sm:$0xff]
    %v128 = vld [vmem:[%s1 + $0x18] sm:$0xff]
    %v129 = vld [vmem:[%s1 + $0x20] sm:$0xff]
    %v130 = vld [vmem:[%s1 + $0x28] sm:$0xff]
    %v131 = vld [vmem:[%s1 + $0x30] sm:$0xff]
    %v132 = vld [vmem:[%s1 + $0x38] sm:$0xff]
    %v165 = vlaneseq
    %v166 = vand.u32 %v165, 127
    %v167 = vlaneseq
    %v168 = vshrl.u32 %v167, 7
    %v169 = vsub.s32 %v166, %v168
    %v170 = vrot.slane %v62, %v169
    %v171 = vadd.s32 %v166, 4294967288
    %v172 = vlaneseq
    %v173 = vshrl.u32 %v172, 7
    %v174 = vsub.s32 %v171, %v173
    %v175 = vrot.slane %v64, %v174
    %vm176 = vcmask 130112
    %v177 = vsel %vm176, %v175, %v170
    %v178 = vadd.s32 %v166, 4294967280
    %v179 = vlaneseq
    %v180 = vshrl.u32 %v179, 7
    %v181 = vsub.s32 %v178, %v180
    %v182 = vrot.slane %v66, %v181
    %vm183 = vcmask 195712
    %v184 = vsel %vm183, %v182, %v177
    %v185 = vadd.s32 %v166, 4294967272
    %v186 = vlaneseq
    %v187 = vshrl.u32 %v186, 7
    %v188 = vsub.s32 %v185, %v187
    %v189 = vrot.slane %v68, %v188
    %vm190 = vcmask 261312
    %v191 = vsel %vm190, %v189, %v184
    %v192 = vadd.s32 %v166, 4294967264
    %v193 = vlaneseq
    %v194 = vshrl.u32 %v193, 7
    %v195 = vsub.s32 %v192, %v194
    %v196 = vrot.slane %v70, %v195
    %vm197 = vcmask 326912
    %v198 = vsel %vm197, %v196, %v191
    %v199 = vadd.s32 %v166, 4294967256
    %v200 = vlaneseq
    %v201 = vshrl.u32 %v200, 7
    %v202 = vsub.s32 %v199, %v201
    %v203 = vrot.slane %v72, %v202
    %vm204 = vcmask 392512
    %v205 = vsel %vm204, %v203, %v198
    %v206 = vadd.s32 %v166, 4294967248
    %v207 = vlaneseq
    %v208 = vshrl.u32 %v207, 7
    %v209 = vsub.s32 %v206, %v208
    %v210 = vrot.slane %v74, %v209
    %vm211 = vcmask 458112
    %v212 = vsel %vm211, %v210, %v205
    %v213 = vadd.s32 %v166, 4294967240
    %v214 = vlaneseq
    %v215 = vshrl.u32 %v214, 7
    %v216 = vsub.s32 %v213, %v215
    %v217 = vrot.slane %v76, %v216
    %vm218 = vcmask 523712
    %v219 = vsel %vm218, %v217, %v212
    %v220 = vlaneseq
    %v221 = vshrl.u32 %v220, 7
    %v222 = vsub.s32 %v166, %v221
    %v223 = vrot.slane %v78, %v222
    %v224 = vlaneseq
    %v225 = vshrl.u32 %v224, 7
    %v226 = vsub.s32 %v171, %v225
    %v227 = vrot.slane %v80, %v226
    %v228 = vsel %vm176, %v227, %v223
    %v229 = vlaneseq
    %v230 = vshrl.u32 %v229, 7
    %v231 = vsub.s32 %v178, %v230
    %v232 = vrot.slane %v82, %v231
    %v233 = vsel %vm183, %v232, %v228
    %v234 = vlaneseq
    %v235 = vshrl.u32 %v234, 7
    %v236 = vsub.s32 %v185, %v235
    %v237 = vrot.slane %v84, %v236
    %v238 = vsel %vm190, %v237, %v233
    %v239 = vlaneseq
    %v240 = vshrl.u32 %v239, 7
    %v241 = vsub.s32 %v192, %v240
    %v242 = vrot.slane %v86, %v241
    %v243 = vsel %vm197, %v242, %v238
    %v244 = vlaneseq
    %v245 = vshrl.u32 %v244, 7
    %v246 = vsub.s32 %v199, %v245
    %v247 = vrot.slane %v88, %v246
    %v248 = vsel %vm204, %v247, %v243
    %v249 = vlaneseq
    %v250 = vshrl.u32 %v249, 7
    %v251 = vsub.s32 %v206, %v250
    %v252 = vrot.slane %v90, %v251
    %v253 = vsel %vm211, %v252, %v248
    %v254 = vlaneseq
    %v255 = vshrl.u32 %v254, 7
    %v256 = vsub.s32 %v213, %v255
    %v257 = vrot.slane %v92, %v256
    %v258 = vsel %vm218, %v257, %v253
    %v259 = vlaneseq
    %v260 = vshrl.u32 %v259, 7
    %v261 = vsub.s32 %v166, %v260
    %v262 = vrot.slane %v94, %v261
    %v263 = vlaneseq
    %v264 = vshrl.u32 %v263, 7
    %v265 = vsub.s32 %v171, %v264
    %v266 = vrot.slane %v96, %v265
    %v267 = vsel %vm176, %v266, %v262
    %v268 = vlaneseq
    %v269 = vshrl.u32 %v268, 7
    %v270 = vsub.s32 %v178, %v269
    %v271 = vrot.slane %v98, %v270
    %v272 = vsel %vm183, %v271, %v267
    %v273 = vlaneseq
    %v274 = vshrl.u32 %v273, 7
    %v275 = vsub.s32 %v185, %v274
    %v276 = vrot.slane %v100, %v275
    %v277 = vsel %vm190, %v276, %v272
    %v278 = vlaneseq
    %v279 = vshrl.u32 %v278, 7
    %v280 = vsub.s32 %v192, %v279
    %v281 = vrot.slane %v102, %v280
    %v282 = vsel %vm197, %v281, %v277
    %v283 = vlaneseq
    %v284 = vshrl.u32 %v283, 7
    %v285 = vsub.s32 %v199, %v284
    %v286 = vrot.slane %v104, %v285
    %v287 = vsel %vm204, %v286, %v282
    %v288 = vlaneseq
    %v289 = vshrl.u32 %v288, 7
    %v290 = vsub.s32 %v206, %v289
    %v291 = vrot.slane %v106, %v290
    %v292 = vsel %vm211, %v291, %v287
    %v293 = vlaneseq
    %v294 = vshrl.u32 %v293, 7
    %v295 = vsub.s32 %v213, %v294
    %v296 = vrot.slane %v108, %v295
    %v297 = vsel %vm218, %v296, %v292
    %v298 = vlaneseq
    %v299 = vshrl.u32 %v298, 7
    %v300 = vsub.s32 %v166, %v299
    %v301 = vrot.slane %v110, %v300
    %v302 = vlaneseq
    %v303 = vshrl.u32 %v302, 7
    %v304 = vsub.s32 %v171, %v303
    %v305 = vrot.slane %v112, %v304
    %v306 = vsel %vm176, %v305, %v301
    %v307 = vlaneseq
    %v308 = vshrl.u32 %v307, 7
    %v309 = vsub.s32 %v178, %v308
    %v310 = vrot.slane %v114, %v309
    %v311 = vsel %vm183, %v310, %v306
    %v312 = vlaneseq
    %v313 = vshrl.u32 %v312, 7
    %v314 = vsub.s32 %v185, %v313
    %v315 = vrot.slane %v116, %v314
    %v316 = vsel %vm190, %v315, %v311
    %v317 = vlaneseq
    %v318 = vshrl.u32 %v317, 7
    %v319 = vsub.s32 %v192, %v318
    %v320 = vrot.slane %v118, %v319
    %v321 = vsel %vm197, %v320, %v316
    %v322 = vlaneseq
    %v323 = vshrl.u32 %v322, 7
    %v324 = vsub.s32 %v199, %v323
    %v325 = vrot.slane %v120, %v324
    %v326 = vsel %vm204, %v325, %v321
    %v327 = vlaneseq
    %v328 = vshrl.u32 %v327, 7
    %v329 = vsub.s32 %v206, %v328
    %v330 = vrot.slane %v122, %v329
    %v331 = vsel %vm211, %v330, %v326
    %v332 = vlaneseq
    %v333 = vshrl.u32 %v332, 7
    %v334 = vsub.s32 %v213, %v333
    %v335 = vrot.slane %v124, %v334
    %v336 = vsel %vm218, %v335, %v331
    %vm337 = vcmask 1041409
    %v338 = vsel %vm337, %v258, %v219
    %vm339 = vcmask 1042434
    %v340 = vsel %vm339, %v297, %v338
    %vm341 = vcmask 1043459
    %v342 = vsel %vm341, %v336, %v340
    %vm343 = vcmask 523264
    %v344 = vsel %vm343, %v342, 0
    %346 = vmatprep.subr.mxu0 0.0
    %347 = vmatpush1.msra.mxu0 0.0
    %348 = vmatprep.subr.mxu0 0.0
    %349 = vmatpush1.msra.mxu0 0.0
    %350 = vmatprep.subr.mxu0 0.0
    %351 = vmatpush1.msra.mxu0 0.0
    %352 = vmatprep.subr.mxu0 0.0
    %353 = vmatpush1.msra.mxu0 0.0
    %354 = vmatprep.subr.mxu0 0.0
    %355 = vmatpush1.msra.mxu0 0.0
    %356 = vmatprep.subr.mxu0 0.0
    %357 = vmatpush1.msra.mxu0 0.0
    %358 = vmatprep.subr.mxu0 0.0
    %359 = vmatpush1.msra.mxu0 0.0
    %360 = vmatprep.subr.mxu0 0.0
    %361 = vmatpush1.msra.mxu0 0.0
    %362 = vmatprep.subr.mxu0 0.0
    %363 = vmatpush1.msra.mxu0 %v132
    %364 = vmatprep.subr.mxu0 0.0
    %365 = vmatpush1.msra.mxu0 %v131
    %366 = vmatprep.subr.mxu0 0.0
    %367 = vmatpush1.msra.mxu0 %v130
    %368 = vmatprep.subr.mxu0 0.0
    %369 = vmatpush1.msra.mxu0 %v129
    %370 = vmatprep.subr.mxu0 0.0
    %371 = vmatpush1.msra.mxu0 %v128
    %372 = vmatprep.subr.mxu0 0.0
    %373 = vmatpush1.msra.mxu0 %v127
    %374 = vmatprep.subr.mxu0 0.0
    %375 = vmatpush1.msra.mxu0 %v126
    %376 = vmatprep.subr.mxu0 0.0
    %377 = vmatpush1.msra.mxu0 %v125
    %378 = vmatprep.subr.mxu0 0.0
    %379 = vmatpush2.msra.mxu0 0.0
    %380 = vmatprep.subr.mxu0 0.0
    %381 = vmatpush2.msra.mxu0 0.0
    %382 = vmatprep.subr.mxu0 0.0
    %383 = vmatpush2.msra.mxu0 0.0
    %384 = vmatprep.subr.mxu0 0.0
    %385 = vmatpush2.msra.mxu0 0.0
    %386 = vmatprep.subr.mxu0 0.0
    %387 = vmatpush2.msra.mxu0 0.0
    %388 = vmatprep.subr.mxu0 0.0
    %389 = vmatpush2.msra.mxu0 0.0
    %390 = vmatprep.subr.mxu0 0.0
    %391 = vmatpush2.msra.mxu0 0.0
    %392 = vmatprep.subr.mxu0 0.0
    %393 = vmatpush2.msra.mxu0 0.0
    %394 = vmatprep.subr.mxu0 0.0
    %395 = vmatpush2.msra.mxu0 0.0
    %396 = vmatprep.subr.mxu0 0.0
    %397 = vmatpush2.msra.mxu0 0.0
    %398 = vmatprep.subr.mxu0 0.0
    %399 = vmatpush2.msra.mxu0 0.0
    %400 = vmatprep.subr.mxu0 0.0
    %401 = vmatpush2.msra.mxu0 0.0
    %402 = vmatprep.subr.mxu0 0.0
    %403 = vmatpush2.msra.mxu0 0.0
    %404 = vmatprep.subr.mxu0 0.0
    %405 = vmatpush2.msra.mxu0 0.0
    %406 = vmatprep.subr.mxu0 0.0
    %407 = vmatpush2.msra.mxu0 0.0
    %408 = vmatprep.subr.mxu0 0.0
    %409 = vmatpush2.msra.mxu0 0.0
    %410 = vmatprep.mubr.f32.mxu0 0.0
    %411 = vmatmul.mubr.f32.gmra.mxu0 %v344
    %v412 = vpop.f32.mrf.mxu0
    %v413 = vadd.f32 0.0, %v412
    %v414 = vpop.f32.mrf.mxu0
    %415 = vdwg.mxu0
    %v416 = vmax.f32 %v413, 0.0
    %v417 = vld [vmem:[%s2] sm:$0xf]
    %vm418 = vcmask 31744
    %v420 = vsel %vm418, %v416, 0
    %vm422 = vcmask 1043456
    %v424 = vsel %vm422, %v417, 0
    %426 = vmatprep.subr.mxu0 0.0
    %427 = vmatpush1.msra.mxu0 0.0
    %428 = vmatprep.subr.mxu0 0.0
    %429 = vmatpush1.msra.mxu0 0.0
    %430 = vmatprep.subr.mxu0 0.0
    %431 = vmatpush1.msra.mxu0 0.0
    %432 = vmatprep.subr.mxu0 0.0
    %433 = vmatpush1.msra.mxu0 0.0
    %434 = vmatprep.subr.mxu0 0.0
    %435 = vmatpush1.msra.mxu0 0.0
    %436 = vmatprep.subr.mxu0 0.0
    %437 = vmatpush1.msra.mxu0 0.0
    %438 = vmatprep.subr.mxu0 0.0
    %439 = vmatpush1.msra.mxu0 0.0
    %440 = vmatprep.subr.mxu0 0.0
    %441 = vmatpush1.msra.mxu0 0.0
    %442 = vmatprep.subr.mxu0 0.0
    %443 = vmatpush1.msra.mxu0 0.0
    %444 = vmatprep.subr.mxu0 0.0
    %445 = vmatpush1.msra.mxu0 0.0
    %446 = vmatprep.subr.mxu0 0.0
    %447 = vmatpush1.msra.mxu0 0.0
    %448 = vmatprep.subr.mxu0 0.0
    %449 = vmatpush1.msra.mxu0 0.0
    %450 = vmatprep.subr.mxu0 0.0
    %451 = vmatpush1.msra.mxu0 0.0
    %452 = vmatprep.subr.mxu0 0.0
    %453 = vmatpush1.msra.mxu0 0.0
    %454 = vmatprep.subr.mxu0 0.0
    %455 = vmatpush1.msra.mxu0 0.0
    %456 = vmatprep.subr.mxu0 0.0
    %457 = vmatpush1.msra.mxu0 %v424
    %458 = vmatprep.subr.mxu0 0.0
    %459 = vmatpush2.msra.mxu0 0.0
    %460 = vmatprep.subr.mxu0 0.0
    %461 = vmatpush2.msra.mxu0 0.0
    %462 = vmatprep.subr.mxu0 0.0
    %463 = vmatpush2.msra.mxu0 0.0
    %464 = vmatprep.subr.mxu0 0.0
    %465 = vmatpush2.msra.mxu0 0.0
    %466 = vmatprep.subr.mxu0 0.0
    %467 = vmatpush2.msra.mxu0 0.0
    %468 = vmatprep.subr.mxu0 0.0
    %469 = vmatpush2.msra.mxu0 0.0
    %470 = vmatprep.subr.mxu0 0.0
    %471 = vmatpush2.msra.mxu0 0.0
    %472 = vmatprep.subr.mxu0 0.0
    %473 = vmatpush2.msra.mxu0 0.0
    %474 = vmatprep.subr.mxu0 0.0
    %475 = vmatpush2.msra.mxu0 0.0
    %476 = vmatprep.subr.mxu0 0.0
    %477 = vmatpush2.msra.mxu0 0.0
    %478 = vmatprep.subr.mxu0 0.0
    %479 = vmatpush2.msra.mxu0 0.0
    %480 = vmatprep.subr.mxu0 0.0
    %481 = vmatpush2.msra.mxu0 0.0
    %482 = vmatprep.subr.mxu0 0.0
    %483 = vmatpush2.msra.mxu0 0.0
    %484 = vmatprep.subr.mxu0 0.0
    %485 = vmatpush2.msra.mxu0 0.0
    %486 = vmatprep.subr.mxu0 0.0
    %487 = vmatpush2.msra.mxu0 0.0
    %488 = vmatprep.subr.mxu0 0.0
    %489 = vmatpush2.msra.mxu0 0.0
    %490 = vmatprep.mubr.f32.mxu0 0.0
    %491 = vmatmul.mubr.f32.gmra.mxu0 %v420
    %v492 = vpop.f32.mrf.mxu0
    %v493 = vadd.f32 0.0, %v492
    %v494 = vpop.f32.mrf.mxu0
    %495 = vdwg.mxu0
    %v496 = vxor.u32 %v493, 2147483648
    %v497 = vmul.f32 %v496, 1.442695
    %v498 = vpow.pop %v497
    %v499 = vadd.f32 %v498, 1.0
    %v500 = vrcp.pop %v499
    %v501 = vmul.f32 1.0, %v500
    %v502 = vlaneseq
    %v503 = vshrl.u32 %v502, 7
    %v504 = vsub.s32 0, %v503
    %v505 = vrot.slane %v501, %v504
    %507 = vbcast.lane.b32.xlu0 %v505, 256
    %v508 = vpop.permute.xlu0 %507
    %s510 = sor.u32 256, 8
    %511 = vbcast.lane.b32.xlu0 %v505, %s510
    %v512 = vpop.permute.xlu0 %511
    %s514 = sor.u32 256, 16
    %515 = vbcast.lane.b32.xlu0 %v505, %s514
    %v516 = vpop.permute.xlu0 %515
    %s518 = sor.u32 256, 24
    %519 = vbcast.lane.b32.xlu0 %v505, %s518
    %v520 = vpop.permute.xlu0 %519
    %s522 = sor.u32 256, 32
    %523 = vbcast.lane.b32.xlu0 %v505, %s522
    %v524 = vpop.permute.xlu0 %523
    %s526 = sor.u32 256, 40
    %527 = vbcast.lane.b32.xlu0 %v505, %s526
    %v528 = vpop.permute.xlu0 %527
    %s530 = sor.u32 256, 48
    %531 = vbcast.lane.b32.xlu0 %v505, %s530
    %v532 = vpop.permute.xlu0 %531
    %s534 = sor.u32 256, 56
    %535 = vbcast.lane.b32.xlu0 %v505, %s534
    %v536 = vpop.permute.xlu0 %535
    %v537 = vlaneseq
    %v538 = vshrl.u32 %v537, 7
    %v539 = vsub.s32 1, %v538
    %v540 = vrot.slane %v501, %v539
    %542 = vbcast.lane.b32.xlu0 %v540, 256
    %v543 = vpop.permute.xlu0 %542
    %s545 = sor.u32 256, 8
    %546 = vbcast.lane.b32.xlu0 %v540, %s545
    %v547 = vpop.permute.xlu0 %546
    %s549 = sor.u32 256, 16
    %550 = vbcast.lane.b32.xlu0 %v540, %s549
    %v551 = vpop.permute.xlu0 %550
    %s553 = sor.u32 256, 24
    %554 = vbcast.lane.b32.xlu0 %v540, %s553
    %v555 = vpop.permute.xlu0 %554
    %s557 = sor.u32 256, 32
    %558 = vbcast.lane.b32.xlu0 %v540, %s557
    %v559 = vpop.permute.xlu0 %558
    %s561 = sor.u32 256, 40
    %562 = vbcast.lane.b32.xlu0 %v540, %s561
    %v563 = vpop.permute.xlu0 %562
    %s565 = sor.u32 256, 48
    %566 = vbcast.lane.b32.xlu0 %v540, %s565
    %v567 = vpop.permute.xlu0 %566
    %s569 = sor.u32 256, 56
    %570 = vbcast.lane.b32.xlu0 %v540, %s569
    %v571 = vpop.permute.xlu0 %570
    %v572 = vlaneseq
    %v573 = vshrl.u32 %v572, 7
    %v574 = vsub.s32 2, %v573
    %v575 = vrot.slane %v501, %v574
    %577 = vbcast.lane.b32.xlu0 %v575, 256
    %v578 = vpop.permute.xlu0 %577
    %s580 = sor.u32 256, 8
    %581 = vbcast.lane.b32.xlu0 %v575, %s580
    %v582 = vpop.permute.xlu0 %581
    %s584 = sor.u32 256, 16
    %585 = vbcast.lane.b32.xlu0 %v575, %s584
    %v586 = vpop.permute.xlu0 %585
    %s588 = sor.u32 256, 24
    %589 = vbcast.lane.b32.xlu0 %v575, %s588
    %v590 = vpop.permute.xlu0 %589
    %s592 = sor.u32 256, 32
    %593 = vbcast.lane.b32.xlu0 %v575, %s592
    %v594 = vpop.permute.xlu0 %593
    %s596 = sor.u32 256, 40
    %597 = vbcast.lane.b32.xlu0 %v575, %s596
    %v598 = vpop.permute.xlu0 %597
    %s600 = sor.u32 256, 48
    %601 = vbcast.lane.b32.xlu0 %v575, %s600
    %v602 = vpop.permute.xlu0 %601
    %s604 = sor.u32 256, 56
    %605 = vbcast.lane.b32.xlu0 %v575, %s604
    %v606 = vpop.permute.xlu0 %605
    %v607 = vlaneseq
    %v608 = vshrl.u32 %v607, 7
    %v609 = vsub.s32 3, %v608
    %v610 = vrot.slane %v501, %v609
    %612 = vbcast.lane.b32.xlu0 %v610, 256
    %v613 = vpop.permute.xlu0 %612
    %s615 = sor.u32 256, 8
    %616 = vbcast.lane.b32.xlu0 %v610, %s615
    %v617 = vpop.permute.xlu0 %616
    %s619 = sor.u32 256, 16
    %620 = vbcast.lane.b32.xlu0 %v610, %s619
    %v621 = vpop.permute.xlu0 %620
    %s623 = sor.u32 256, 24
    %624 = vbcast.lane.b32.xlu0 %v610, %s623
    %v625 = vpop.permute.xlu0 %624
    %s627 = sor.u32 256, 32
    %628 = vbcast.lane.b32.xlu0 %v610, %s627
    %v629 = vpop.permute.xlu0 %628
    %s631 = sor.u32 256, 40
    %632 = vbcast.lane.b32.xlu0 %v610, %s631
    %v633 = vpop.permute.xlu0 %632
    %s635 = sor.u32 256, 48
    %636 = vbcast.lane.b32.xlu0 %v610, %s635
    %v637 = vpop.permute.xlu0 %636
    %s639 = sor.u32 256, 56
    %640 = vbcast.lane.b32.xlu0 %v610, %s639
    %v641 = vpop.permute.xlu0 %640
    %v642 = vmul.f32 %v29, %v508
    %v643 = vmul.f32 %v30, %v512
    %v644 = vmul.f32 %v31, %v516
    %v645 = vmul.f32 %v32, %v520
    %v646 = vmul.f32 %v33, %v524
    %v647 = vmul.f32 %v34, %v528
    %v648 = vmul.f32 %v35, %v532
    %v649 = vmul.f32 %v36, %v536
    %v650 = vmul.f32 %v37, %v543
    %v651 = vmul.f32 %v38, %v547
    %v652 = vmul.f32 %v39, %v551
    %v653 = vmul.f32 %v40, %v555
    %v654 = vmul.f32 %v41, %v559
    %v655 = vmul.f32 %v42, %v563
    %v656 = vmul.f32 %v43, %v567
    %v657 = vmul.f32 %v44, %v571
    %v658 = vmul.f32 %v45, %v578
    %v659 = vmul.f32 %v46, %v582
    %v660 = vmul.f32 %v47, %v586
    %v661 = vmul.f32 %v48, %v590
    %v662 = vmul.f32 %v49, %v594
    %v663 = vmul.f32 %v50, %v598
    %v664 = vmul.f32 %v51, %v602
    %v665 = vmul.f32 %v52, %v606
    %v666 = vmul.f32 %v53, %v613
    %v667 = vmul.f32 %v54, %v617
    %v668 = vmul.f32 %v55, %v621
    %v669 = vmul.f32 %v56, %v625
    %v670 = vmul.f32 %v57, %v629
    %v671 = vmul.f32 %v58, %v633
    %v672 = vmul.f32 %v59, %v637
    %v673 = vmul.f32 %v60, %v641
    %674 = vst [vmem:[#allocation5] sm:$0xff] %v642
    %675 = vst [vmem:[#allocation5 + $0x8] sm:$0xff] %v643
    %676 = vst [vmem:[#allocation5 + $0x10] sm:$0xff] %v644
    %677 = vst [vmem:[#allocation5 + $0x18] sm:$0xff] %v645
    %678 = vst [vmem:[#allocation5 + $0x20] sm:$0xff] %v646
    %679 = vst [vmem:[#allocation5 + $0x28] sm:$0xff] %v647
    %680 = vst [vmem:[#allocation5 + $0x30] sm:$0xff] %v648
    %681 = vst [vmem:[#allocation5 + $0x38] sm:$0xff] %v649
    %682 = vst [vmem:[#allocation5 + $0x40] sm:$0xff] %v650
    %683 = vst [vmem:[#allocation5 + $0x48] sm:$0xff] %v651
    %684 = vst [vmem:[#allocation5 + $0x50] sm:$0xff] %v652
    %685 = vst [vmem:[#allocation5 + $0x58] sm:$0xff] %v653
    %686 = vst [vmem:[#allocation5 + $0x60] sm:$0xff] %v654
    %687 = vst [vmem:[#allocation5 + $0x68] sm:$0xff] %v655
    %688 = vst [vmem:[#allocation5 + $0x70] sm:$0xff] %v656
    %689 = vst [vmem:[#allocation5 + $0x78] sm:$0xff] %v657
    %690 = vst [vmem:[#allocation5 + $0x80] sm:$0xff] %v658
    %691 = vst [vmem:[#allocation5 + $0x88] sm:$0xff] %v659
    %692 = vst [vmem:[#allocation5 + $0x90] sm:$0xff] %v660
    %693 = vst [vmem:[#allocation5 + $0x98] sm:$0xff] %v661
    %694 = vst [vmem:[#allocation5 + $0xa0] sm:$0xff] %v662
    %695 = vst [vmem:[#allocation5 + $0xa8] sm:$0xff] %v663
    %696 = vst [vmem:[#allocation5 + $0xb0] sm:$0xff] %v664
    %697 = vst [vmem:[#allocation5 + $0xb8] sm:$0xff] %v665
    %698 = vst [vmem:[#allocation5 + $0xc0] sm:$0xff] %v666
    %699 = vst [vmem:[#allocation5 + $0xc8] sm:$0xff] %v667
    %700 = vst [vmem:[#allocation5 + $0xd0] sm:$0xff] %v668
    %701 = vst [vmem:[#allocation5 + $0xd8] sm:$0xff] %v669
    %702 = vst [vmem:[#allocation5 + $0xe0] sm:$0xff] %v670
    %703 = vst [vmem:[#allocation5 + $0xe8] sm:$0xff] %v671
    %704 = vst [vmem:[#allocation5 + $0xf0] sm:$0xff] %v672
    %705 = vst [vmem:[#allocation5 + $0xf8] sm:$0xff] %v673
    // Predicated region
    $region18: #{tpu_custom_call.1} parent=1 // pred_check
      _
    $region19: #{tpu_custom_call.1} parent=1 // pred_check_branch
      %707 = sbr.rel (0) target = $region21
    $region20: #{tpu_custom_call.1} parent=1 // pred_region
      %s709 = ssub.s32 4096, 4096
      %710 = vsyncadd [#allocation4], %s709
      %s711 = sshll.u32 [#allocation5], 4
      %s712 = int_to_ptr.vmem [resolvable:$true] %s711
      %717 = dma.vmem_to_hbm [thread:$0]  %s712, 4096, %s3, [#allocation4], 128, 128, 8
    $region21: #{tpu_custom_call.1} parent=1 // pred_fallthru
      _
    // Predicated region
    $region22: #{tpu_custom_call.1} parent=1 // pred_check
      _
    $region23: #{tpu_custom_call.1} parent=1 // pred_check_branch
      %719 = sbr.rel (0) target = $region25
    $region24: #{tpu_custom_call.1} parent=1 // pred_region
      %720 = dma.done [#allocation4], 4096
    $region25: #{tpu_custom_call.1} parent=1 // pred_fallthru
      _
    %721 = vsyncpa [#allocation3], 1
    %722 = vsyncpa [#allocation4], 1

</llo_original>
